<compile_context>
chip_gen: v7x
topology: tpu7x:2x2x1
jax: 0.10.0
libtpu: 0.0.40
codegen_flags: <defaults>
</compile_context>

<pallas_src>
import functools

import jax
import jax.numpy as jnp
from jax.experimental import pallas as pl
from jax.experimental.pallas import tpu as pltpu


def _sc_partial_kernel(p_ref, t_ref, dsq_ref, tsq_ref):
    """One grid step: reduce a (tm, sub, 128) native-dtype tile to f32 partials."""
    p = p_ref[...].astype(jnp.float32)          # upcast on-chip only
    t = t_ref[...].astype(jnp.float32)
    d = t - p
    # Lane/sublane-preserving reduction over the slab axis: pure VPU adds,
    # no cross-lane work, no scalar accumulation.
    dsq_ref[...] = jnp.sum(d * d, axis=0, keepdims=True)   # (1, sub, 128)
    tsq_ref[...] = jnp.sum(t * t, axis=0, keepdims=True)   # (1, sub, 128)


def _slab_sublanes(dtype):
    """Sublanes per vreg slab so one slab matches the packed layout (4 KiB)."""
    return {1: 32, 2: 16, 4: 8}[jnp.dtype(dtype).itemsize]


@functools.partial(jax.jit, static_argnames=("tile_slabs",))
def spectral_convergence(predicts_mag, targets_mag, tile_slabs=512):
    """||targets - predicts||_F / ||targets||_F over arbitrarily-shaped mags.

    tile_slabs: 4 KiB slabs per grid step; 512 => ~2 MiB per input per step
    (safe on v5e's 16 MiB scoped-VMEM default; near roofline on v6e/v7x).
    """
    assert predicts_mag.shape == targets_mag.shape

    dtype = jnp.promote_types(predicts_mag.dtype, targets_mag.dtype)
    if jnp.dtype(dtype).itemsize not in (1, 2, 4):
        dtype = jnp.float32                      # e.g. f64 inputs -> stream f32

    # reshape(-1) of a contiguous array is a bitcast; astype is a no-op when the
    # dtype already matches (the common case) -> no wrapper up-cast copies.
    p = predicts_mag.reshape(-1).astype(dtype)
    t = targets_mag.reshape(-1).astype(dtype)
    n = p.shape[0]

    sub, lane = _slab_sublanes(dtype), 128
    slab = sub * lane
    m_slabs = n // slab                          # whole vreg slabs

    sum_dsq = jnp.zeros((), jnp.float32)
    sum_tsq = jnp.zeros((), jnp.float32)

    n_kernel = 0
    if m_slabs > 0:
        # Slabs per tile: as close to tile_slabs as possible, but always >= 2
        # load-balanced grid steps when the input allows it (v7x megacore).
        nt = -(-m_slabs // tile_slabs)           # ceil
        if m_slabs >= 2:
            nt = max(2, nt)
        tm = max(1, m_slabs // nt)               # slabs per grid step (<= tile_slabs)
        num_tiles = m_slabs // tm
        n_kernel = num_tiles * tm * slab
        itemsize = jnp.dtype(dtype).itemsize

        p3 = p[:n_kernel].reshape(num_tiles * tm, sub, lane)
        t3 = t[:n_kernel].reshape(num_tiles * tm, sub, lane)

        dsq_part, tsq_part = pl.pallas_call(
            _sc_partial_kernel,
            out_shape=(
                jax.ShapeDtypeStruct((num_tiles, sub, lane), jnp.float32),
                jax.ShapeDtypeStruct((num_tiles, sub, lane), jnp.float32),
            ),
            grid_spec=pl.GridSpec(
                grid=(num_tiles,),
                in_specs=[
                    pl.BlockSpec((tm, sub, lane), lambda i: (i, 0, 0)),  # predicts
                    pl.BlockSpec((tm, sub, lane), lambda i: (i, 0, 0)),  # targets
                ],
                out_specs=(
                    pl.BlockSpec((1, sub, lane), lambda i: (i, 0, 0)),   # sum (t-p)^2
                    pl.BlockSpec((1, sub, lane), lambda i: (i, 0, 0)),   # sum t^2
                ),
            ),
            compiler_params=pltpu.CompilerParams(
                dimension_semantics=("parallel",)),   # disjoint tiles -> megacore OK
            cost_estimate=pl.CostEstimate(
                flops=5 * n_kernel,
                transcendentals=0,
                bytes_accessed=2 * n_kernel * itemsize + 2 * num_tiles * slab * 4),
        )(p3, t3)

        sum_dsq = sum_dsq + jnp.sum(dsq_part)
        sum_tsq = sum_tsq + jnp.sum(tsq_part)

    if n_kernel < n:
        # Ragged tail (smaller than one tile): exact, tiny, plain-JAX reduce.
        pt = p[n_kernel:].astype(jnp.float32)
        tt = t[n_kernel:].astype(jnp.float32)
        dt = tt - pt
        sum_dsq = sum_dsq + jnp.sum(dt * dt)
        sum_tsq = sum_tsq + jnp.sum(tt * tt)

    # Same semantics as torch.norm(t - p, 'fro') / torch.norm(t, 'fro')
    # (all-zero targets -> inf/nan, matching the PyTorch reference).
    return jnp.sqrt(sum_dsq) / jnp.sqrt(sum_tsq)


class SpectralConvergence:
    """JAX/Pallas port of the PyTorch SpectralConvergence module."""

    def __call__(self, predicts_mag, targets_mag):
        return spectral_convergence(predicts_mag, targets_mag)


if __name__ == "__main__":
    # Small magnitude-spectrogram-shaped inputs, consistent with the module's
    # forward(predicts_mag, targets_mag): (batch, n_freq, n_frames).
    B, n_freq, n_frames = 2, 257, 16

    key = jax.random.PRNGKey(0)
    kp, kt = jax.random.split(key)
    predicts_mag = jnp.abs(jax.random.normal(kp, (B, n_freq, n_frames), dtype=jnp.float32))
    targets_mag = jnp.abs(jax.random.normal(kt, (B, n_freq, n_frames), dtype=jnp.float32))

    loss_fn = SpectralConvergence()
    sc = jax.block_until_ready(loss_fn(predicts_mag, targets_mag))

    # Pure-JAX reference (torch.norm(t - p, 'fro') / torch.norm(t, 'fro')).
    ref = (jnp.linalg.norm((targets_mag - predicts_mag).reshape(-1))
           / jnp.linalg.norm(targets_mag.reshape(-1)))
    assert jnp.allclose(sc, ref, rtol=1e-5, atol=1e-6), (float(sc), float(ref))

    # Native-dtype (bf16) streaming path: (16,128) slabs, on-chip f32 upcast.
    p16 = predicts_mag.astype(jnp.bfloat16)
    t16 = targets_mag.astype(jnp.bfloat16)
    sc16 = jax.block_until_ready(loss_fn(p16, t16))
    ref16 = (jnp.linalg.norm(t16.astype(jnp.float32) - p16.astype(jnp.float32))
             / jnp.linalg.norm(t16.astype(jnp.float32)))
    assert jnp.allclose(sc16, ref16, rtol=1e-3, atol=1e-4), (float(sc16), float(ref16))

    print("KERNEL_OK")
</pallas_src>

<mosaic_0001>
module attributes {stable_mosaic.version = 11 : i64} {
  func.func @_sc_partial_kernel(%arg0: i32, %arg1: memref<4x8x128xf32, #tpu.memory_space<vmem>>, %arg2: memref<4x8x128xf32, #tpu.memory_space<vmem>>, %arg3: memref<1x8x128xf32, #tpu.memory_space<vmem>>, %arg4: memref<1x8x128xf32, #tpu.memory_space<vmem>>) attributes {dimension_semantics = [#tpu.dimension_semantics<parallel>], iteration_bounds = array<i64: 2>, scalar_prefetch = 0 : i64, scratch_operands = 0 : i64, tpu.core_type = #tpu.core_type<tc>, window_params = [{transform_indices = @transform_0, window_bounds = array<i64: 4, 8, 128>}, {transform_indices = @transform_1, window_bounds = array<i64: 4, 8, 128>}, {transform_indices = @transform_2, window_bounds = array<i64: 1, 8, 128>}, {transform_indices = @transform_3, window_bounds = array<i64: 1, 8, 128>}]} {
    %c0 = arith.constant 0 : index
    %c0_0 = arith.constant 0 : index
    %c0_1 = arith.constant 0 : index
    %0 = vector.load %arg1[%c0, %c0_0, %c0_1] : memref<4x8x128xf32, #tpu.memory_space<vmem>>, vector<4x8x128xf32>
    %c0_2 = arith.constant 0 : index
    %c0_3 = arith.constant 0 : index
    %c0_4 = arith.constant 0 : index
    %1 = vector.load %arg2[%c0_2, %c0_3, %c0_4] : memref<4x8x128xf32, #tpu.memory_space<vmem>>, vector<4x8x128xf32>
    %2 = arith.subf %1, %0 : vector<4x8x128xf32>
    %3 = arith.mulf %2, %2 : vector<4x8x128xf32>
    %cst = arith.constant dense<0.000000e+00> : vector<8x128xf32>
    %4 = vector.multi_reduction <add>, %3, %cst [0] : vector<4x8x128xf32> to vector<8x128xf32>
    %5 = vector.shape_cast %4 : vector<8x128xf32> to vector<1x8x128xf32>
    %c0_5 = arith.constant 0 : index
    %c0_6 = arith.constant 0 : index
    %c0_7 = arith.constant 0 : index
    %6 = vector.load %arg3[%c0_5, %c0_6, %c0_7] : memref<1x8x128xf32, #tpu.memory_space<vmem>>, vector<1x8x128xf32>
    tpu.vector_store %arg3[%c0_5, %c0_6, %c0_7], %5 {strides = array<i32>} : memref<1x8x128xf32, #tpu.memory_space<vmem>>, vector<1x8x128xf32>,
    %7 = arith.mulf %1, %1 : vector<4x8x128xf32>
    %cst_8 = arith.constant dense<0.000000e+00> : vector<8x128xf32>
    %8 = vector.multi_reduction <add>, %7, %cst_8 [0] : vector<4x8x128xf32> to vector<8x128xf32>
    %9 = vector.shape_cast %8 : vector<8x128xf32> to vector<1x8x128xf32>
    %c0_9 = arith.constant 0 : index
    %c0_10 = arith.constant 0 : index
    %c0_11 = arith.constant 0 : index
    %10 = vector.load %arg4[%c0_9, %c0_10, %c0_11] : memref<1x8x128xf32, #tpu.memory_space<vmem>>, vector<1x8x128xf32>
    tpu.vector_store %arg4[%c0_9, %c0_10, %c0_11], %9 {strides = array<i32>} : memref<1x8x128xf32, #tpu.memory_space<vmem>>, vector<1x8x128xf32>,
    return
  }
  func.func @transform_0(%arg0: i32) -> (i32, i32, i32) {
    %c0_i32 = arith.constant 0 : i32
    %c0_i32_0 = arith.constant 0 : i32
    %c0_i32_1 = arith.constant 0 : i32
    return %arg0, %c0_i32, %c0_i32_0 : i32, i32, i32
  }
  func.func @transform_1(%arg0: i32) -> (i32, i32, i32) {
    %c0_i32 = arith.constant 0 : i32
    %c0_i32_0 = arith.constant 0 : i32
    %c0_i32_1 = arith.constant 0 : i32
    return %arg0, %c0_i32, %c0_i32_0 : i32, i32, i32
  }
  func.func @transform_2(%arg0: i32) -> (i32, i32, i32) {
    %c0_i32 = arith.constant 0 : i32
    %c0_i32_0 = arith.constant 0 : i32
    %c0_i32_1 = arith.constant 0 : i32
    return %arg0, %c0_i32, %c0_i32_0 : i32, i32, i32
  }
  func.func @transform_3(%arg0: i32) -> (i32, i32, i32) {
    %c0_i32 = arith.constant 0 : i32
    %c0_i32_0 = arith.constant 0 : i32
    %c0_i32_1 = arith.constant 0 : i32
    return %arg0, %c0_i32, %c0_i32_0 : i32, i32, i32
  }
}

</mosaic_0001>

<llo_original>
// kernel: spectral_convergence.1
$region0: #{spectral_convergence.1}
  #allocation0 [shape = 'u32[]', space=smem, size = 0x4, offset = 0x4, fixed_abs, tag = 'smem constant byte address 0x4 - core index']
  #allocation1 [shape = 'u32[144,128]{1,0:T(1,128)}', space=vmem, size = 0x12000, scoped, tag = 'internal scratch']
  %s0 = inlined_call_operand.vmem [shape: f32[8,8,128], index: 0, kind: input, shape index: {}]
  %s1 = inlined_call_operand.vmem [shape: f32[8,8,128], index: 1, kind: input, shape index: {}]
  %s2 = inlined_call_operand.vmem [shape: f32[2,8,128], index: 2, kind: output, shape index: {0}]
  %s3 = inlined_call_operand.vmem [shape: f32[2,8,128], index: 3, kind: output, shape index: {1}]
  %4 = xla_tuple %s2, %s3
  %s5 = sld [smem:[#allocation0]]
  $region49: #{spectral_convergence.1} parent=0
    _
  %s7 = ssub.s32 1, %s5
  %s8 = scalar_select 0, %s7, %s5
  loop: start=0, step=1, limit=4
  $region2: #{spectral_convergence.1} parent=0 // loop_pre_header
    _
  $region3: #{spectral_convergence.1} parent=0 // loop_header
    %s10 = sphi 0, %s14
    %p11 = scmp.ge.s32.totalorder %s10, 4
    %s20 = sphi 0, %s22
    %s23 = sphi 0, %s20
    %s24 = sphi 0, %s23
    %s40 = sphi 0, %s24
    %s46 = sphi 0, %s48
    %s49 = sphi 0, %s46
    %s50 = sphi 0, %s49
    %s66 = sphi 0, %s50
    %s72 = sphi 0, %s74
    %s75 = sphi 0, %s72
    %s76 = sphi 0, %s75
    %s92 = sphi 0, %s76
    %s98 = sphi 0, %s100
    %s101 = sphi 0, %s98
    %s102 = sphi 0, %s101
    %s118 = sphi 0, %s102
  $region4: #{spectral_convergence.1} parent=0 // loop_header_branch
    %13 = sbr.rel (%p11) target = $region8
  $region5: #{spectral_convergence.1} parent=0 // loop_body
    %s15 = ssub.s32 %s10, 1
    %s16 = ssub.s32 %s10, 2
    %s17 = sadd.s32 %s10, 1
    %s18 = ssub.s32 %s10, %s17
    %p19 = scmp.eq.s32.totalorder %s18, 0
    %s21 = sadd.s32 %s20, 1
    %s22 = scalar_select %p19, %s20, %s21
    %p25 = pneg %p19
    %p26 = scmp.eq.s32.totalorder %s10, 1
    %p27 = por %p25, %p26
    %p28 = scmp.ne.s32.totalorder %s20, %s23
    %p29 = scmp.eq.s32.totalorder %s10, 0
    %p30 = por %p28, %p29
    %p31 = scmp.ne.s32.totalorder %s20, %s23
    %p32 = scmp.eq.s32.totalorder %s15, 1
    %p33 = por %p31, %p32
    %p34 = scmp.ne.s32.totalorder %s23, %s24
    %p35 = scmp.eq.s32.totalorder %s15, 0
    %p36 = por %p34, %p35
    %p37 = scmp.ne.s32.totalorder %s23, %s24
    %p38 = scmp.eq.s32.totalorder %s16, 1
    %p39 = por %p37, %p38
    %p41 = scmp.ne.s32.totalorder %s24, %s40
    %p42 = scmp.eq.s32.totalorder %s16, 0
    %p43 = por %p41, %p42
    %s44 = ssub.s32 %s10, %s17
    %p45 = scmp.eq.s32.totalorder %s44, 0
    %s47 = sadd.s32 %s46, 1
    %s48 = scalar_select %p45, %s46, %s47
    %p51 = pneg %p45
    %p52 = scmp.eq.s32.totalorder %s10, 1
    %p53 = por %p51, %p52
    %p54 = scmp.ne.s32.totalorder %s46, %s49
    %p55 = scmp.eq.s32.totalorder %s10, 0
    %p56 = por %p54, %p55
    %p57 = scmp.ne.s32.totalorder %s46, %s49
    %p58 = scmp.eq.s32.totalorder %s15, 1
    %p59 = por %p57, %p58
    %p60 = scmp.ne.s32.totalorder %s49, %s50
    %p61 = scmp.eq.s32.totalorder %s15, 0
    %p62 = por %p60, %p61
    %p63 = scmp.ne.s32.totalorder %s49, %s50
    %p64 = scmp.eq.s32.totalorder %s16, 1
    %p65 = por %p63, %p64
    %p67 = scmp.ne.s32.totalorder %s50, %s66
    %p68 = scmp.eq.s32.totalorder %s16, 0
    %p69 = por %p67, %p68
    %s70 = ssub.s32 %s10, %s17
    %p71 = scmp.eq.s32.totalorder %s70, 0
    %s73 = sadd.s32 %s72, 1
    %s74 = scalar_select %p71, %s72, %s73
    %p77 = pneg %p71
    %p78 = scmp.eq.s32.totalorder %s10, 1
    %p79 = por %p77, %p78
    %p80 = scmp.ne.s32.totalorder %s72, %s75
    %p81 = scmp.eq.s32.totalorder %s10, 0
    %p82 = por %p80, %p81
    %p83 = scmp.ne.s32.totalorder %s72, %s75
    %p84 = scmp.eq.s32.totalorder %s15, 1
    %p85 = por %p83, %p84
    %p86 = scmp.ne.s32.totalorder %s75, %s76
    %p87 = scmp.eq.s32.totalorder %s15, 0
    %p88 = por %p86, %p87
    %p89 = scmp.ne.s32.totalorder %s75, %s76
    %p90 = scmp.eq.s32.totalorder %s16, 1
    %p91 = por %p89, %p90
    %p93 = scmp.ne.s32.totalorder %s76, %s92
    %p94 = scmp.eq.s32.totalorder %s16, 0
    %p95 = por %p93, %p94
    %s96 = ssub.s32 %s10, %s17
    %p97 = scmp.eq.s32.totalorder %s96, 0
    %s99 = sadd.s32 %s98, 1
    %s100 = scalar_select %p97, %s98, %s99
    %p103 = pneg %p97
    %p104 = scmp.eq.s32.totalorder %s10, 1
    %p105 = por %p103, %p104
    %p106 = scmp.ne.s32.totalorder %s98, %s101
    %p107 = scmp.eq.s32.totalorder %s10, 0
    %p108 = por %p106, %p107
    %p109 = scmp.ne.s32.totalorder %s98, %s101
    %p110 = scmp.eq.s32.totalorder %s15, 1
    %p111 = por %p109, %p110
    %p112 = scmp.ne.s32.totalorder %s101, %s102
    %p113 = scmp.eq.s32.totalorder %s15, 0
    %p114 = por %p112, %p113
    %p115 = scmp.ne.s32.totalorder %s101, %s102
    %p116 = scmp.eq.s32.totalorder %s16, 1
    %p117 = por %p115, %p116
    %p119 = scmp.ne.s32.totalorder %s102, %s118
    %p120 = scmp.eq.s32.totalorder %s16, 0
    %p121 = por %p119, %p120
    %p122 = scmp.le.s32.totalorder 1, %s10
    %p123 = scmp.lt.s32.totalorder %s10, 3
    %p124 = pnand %p122, %p123
    %p125 = pneg %p124
    // Predicated region
    $region9: #{spectral_convergence.1} parent=5 // pred_check
      _
    $region10: #{spectral_convergence.1} parent=5 // pred_check_branch
      %127 = sbr.rel (%p124) target = $region12
    $region11: #{spectral_convergence.1} parent=5 // pred_region
      %s128 = ssub.s32 %s10, 1
    $region12: #{spectral_convergence.1} parent=5 // pred_fallthru
      _
    %p129 = scmp.lt.s32.totalorder %s10, 2
    // Predicated region
    $region13: #{spectral_convergence.1} parent=5 // pred_check
      %p130 = pneg %p129
    $region14: #{spectral_convergence.1} parent=5 // pred_check_branch
      %132 = sbr.rel (%p130) target = $region16
    $region15: #{spectral_convergence.1} parent=5 // pred_region
      // Predicated region
      $region17: #{spectral_convergence.1} parent=15 // pred_check
        %p133 = pneg %p30
      $region18: #{spectral_convergence.1} parent=15 // pred_check_branch
        %135 = sbr.rel (%p133) target = $region20
      $region19: #{spectral_convergence.1} parent=15 // pred_region
        %s136 = smul.u32 4, %s10
        %p137 = scmp.lt.s32.totalorder %s136, 7
        %s138 = scalar_select %p137, %s136, 7
        %s139 = smul.addr %s138, 8
        %s140 = scalar_lea.vmem %s0, %s139
        %s141 = smul.u32 4, %s10
      $region20: #{spectral_convergence.1} parent=15 // pred_fallthru
        _
      // Predicated region
      $region21: #{spectral_convergence.1} parent=15 // pred_check
        %p142 = pneg %p56
      $region22: #{spectral_convergence.1} parent=15 // pred_check_branch
        %144 = sbr.rel (%p142) target = $region24
      $region23: #{spectral_convergence.1} parent=15 // pred_region
        %s145 = smul.u32 4, %s10
        %p146 = scmp.lt.s32.totalorder %s145, 7
        %s147 = scalar_select %p146, %s145, 7
        %s148 = smul.addr %s147, 8
        %s149 = scalar_lea.vmem %s1, %s148
        %s150 = smul.u32 4, %s10
      $region24: #{spectral_convergence.1} parent=15 // pred_fallthru
        _
    $region16: #{spectral_convergence.1} parent=5 // pred_fallthru
      _
    %p151 = scmp.le.s32.totalorder 1, %s10
    %p152 = scmp.lt.s32.totalorder %s10, 3
    %p153 = pnand %p151, %p152
    %p154 = pneg %p153
    // Predicated region
    $region25: #{spectral_convergence.1} parent=5 // pred_check
      _
    $region26: #{spectral_convergence.1} parent=5 // pred_check_branch
      %156 = sbr.rel (%p153) target = $region28
    $region27: #{spectral_convergence.1} parent=5 // pred_region
      %s157 = ssub.s32 %s10, 1
      %s158 = smul.u32 4, %s15
      %p159 = scmp.lt.s32.totalorder %s158, 7
      %s160 = scalar_select %p159, %s158, 7
      %s161 = smul.addr %s160, 8
      %s162 = scalar_lea.vmem %s0, %s161
      %p163 = pneg %p36
      %p164 = pneg %p33
      %s165 = smul.u32 4, %s15
      %p166 = scmp.lt.s32.totalorder %s165, 7
      %s167 = scalar_select %p166, %s165, 7
      %s168 = smul.addr %s167, 8
      %s169 = scalar_lea.vmem %s1, %s168
      %p170 = pneg %p62
      %p171 = pneg %p59
      %p172 = pneg %p88
      %p173 = pneg %p85
      %p174 = scmp.lt.s32.totalorder %s15, 1
      %s175 = scalar_select %p174, %s15, 1
      %s176 = smul.addr %s175, 8
      %s177 = scalar_lea.vmem %s2, %s176
      %p178 = pneg %p114
      %p179 = pneg %p111
      %p180 = scmp.lt.s32.totalorder %s15, 1
      %s181 = scalar_select %p180, %s15, 1
      %s182 = smul.addr %s181, 8
      %s183 = scalar_lea.vmem %s3, %s182
      %s184 = smul.u32 4, %s15
      %p185 = scmp.lt.s32.totalorder %s184, 7
      %s186 = scalar_select %p185, %s184, 7
      %s187 = smul.addr %s186, 8
      %s188 = scalar_lea.vmem %s0, %s187
      %s189 = smul.u32 4, %s15
      %s190 = smul.u32 4, %s15
      %p191 = scmp.lt.s32.totalorder %s190, 7
      %s192 = scalar_select %p191, %s190, 7
      %s193 = smul.addr %s192, 8
      %s194 = scalar_lea.vmem %s1, %s193
      %s195 = smul.u32 4, %s15
      %p196 = scmp.lt.s32.totalorder %s15, 1
      %s197 = scalar_select %p196, %s15, 1
      %s198 = smul.addr %s197, 8
      %s199 = scalar_lea.vmem %s2, %s198
      %p200 = scmp.lt.s32.totalorder %s15, 1
      %s201 = scalar_select %p200, %s15, 1
      %s202 = smul.addr %s201, 8
      %s203 = scalar_lea.vmem %s3, %s202
      %v204 = vld [vmem:[%s188] sm:$0xff]
      %v205 = vld [vmem:[%s188 + $0x8] sm:$0xff]
      %v206 = vld [vmem:[%s188 + $0x10] sm:$0xff]
      %v207 = vld [vmem:[%s188 + $0x18] sm:$0xff]
      %v208 = vld [vmem:[%s194] sm:$0xff]
      %v209 = vld [vmem:[%s194 + $0x8] sm:$0xff]
      %v210 = vld [vmem:[%s194 + $0x10] sm:$0xff]
      %v211 = vld [vmem:[%s194 + $0x18] sm:$0xff]
      %v212 = vsub.f32 %v208, %v204
      %v213 = vsub.f32 %v209, %v205
      %v214 = vsub.f32 %v210, %v206
      %v215 = vsub.f32 %v211, %v207
      %v216 = vmul.f32 %v212, %v212
      %v217 = vmul.f32 %v213, %v213
      %v218 = vmul.f32 %v214, %v214
      %v219 = vmul.f32 %v215, %v215
      %v220 = vadd.f32 %v216, %v217
      %v221 = vadd.f32 %v220, %v218
      %v222 = vadd.f32 %v221, %v219
      %223 = vst [vmem:[%s199] sm:$0xff] %v222
      %v224 = vmul.f32 %v208, %v208
      %v225 = vmul.f32 %v209, %v209
      %v226 = vmul.f32 %v210, %v210
      %v227 = vmul.f32 %v211, %v211
      %v228 = vadd.f32 %v224, %v225
      %v229 = vadd.f32 %v228, %v226
      %v230 = vadd.f32 %v229, %v227
      %231 = vst [vmem:[%s203] sm:$0xff] %v230
      %p232 = scmp.lt.s32.totalorder %s15, 1
      %s233 = scalar_select %p232, %s15, 1
      %s234 = smul.addr %s233, 8
      %s235 = scalar_lea.vmem %s2, %s234
      %p236 = scmp.lt.s32.totalorder %s15, 1
      %s237 = scalar_select %p236, %s15, 1
      %s238 = smul.addr %s237, 8
      %s239 = scalar_lea.vmem %s3, %s238
      // Predicated region
      $region29: #{spectral_convergence.1} parent=27 // pred_check
        %p240 = pneg %p85
      $region30: #{spectral_convergence.1} parent=27 // pred_check_branch
        %242 = sbr.rel (%p240) target = $region32
      $region31: #{spectral_convergence.1} parent=27 // pred_region
        _
      $region32: #{spectral_convergence.1} parent=27 // pred_fallthru
        _
      // Predicated region
      $region33: #{spectral_convergence.1} parent=27 // pred_check
        %p243 = pneg %p111
      $region34: #{spectral_convergence.1} parent=27 // pred_check_branch
        %245 = sbr.rel (%p243) target = $region36
      $region35: #{spectral_convergence.1} parent=27 // pred_region
        _
      $region36: #{spectral_convergence.1} parent=27 // pred_fallthru
        _
    $region28: #{spectral_convergence.1} parent=5 // pred_fallthru
      _
    %p246 = scmp.le.s32.totalorder 2, %s10
    // Predicated region
    $region37: #{spectral_convergence.1} parent=5 // pred_check
      %p247 = pneg %p246
    $region38: #{spectral_convergence.1} parent=5 // pred_check_branch
      %249 = sbr.rel (%p247) target = $region40
    $region39: #{spectral_convergence.1} parent=5 // pred_region
      %s250 = ssub.s32 %s10, 2
      // Predicated region
      $region41: #{spectral_convergence.1} parent=39 // pred_check
        %p251 = pneg %p91
      $region42: #{spectral_convergence.1} parent=39 // pred_check_branch
        %253 = sbr.rel (%p251) target = $region44
      $region43: #{spectral_convergence.1} parent=39 // pred_region
        %p254 = scmp.lt.s32.totalorder %s16, 1
        %s255 = scalar_select %p254, %s16, 1
        %s256 = smul.addr %s255, 8
        %s257 = scalar_lea.vmem %s2, %s256
      $region44: #{spectral_convergence.1} parent=39 // pred_fallthru
        _
      // Predicated region
      $region45: #{spectral_convergence.1} parent=39 // pred_check
        %p258 = pneg %p117
      $region46: #{spectral_convergence.1} parent=39 // pred_check_branch
        %260 = sbr.rel (%p258) target = $region48
      $region47: #{spectral_convergence.1} parent=39 // pred_region
        %p261 = scmp.lt.s32.totalorder %s16, 1
        %s262 = scalar_select %p261, %s16, 1
        %s263 = smul.addr %s262, 8
        %s264 = scalar_lea.vmem %s3, %s263
      $region48: #{spectral_convergence.1} parent=39 // pred_fallthru
        _
    $region40: #{spectral_convergence.1} parent=5 // pred_fallthru
      _
  $region6: #{spectral_convergence.1} parent=0 // loop_footer
    %s14 = sadd.s32 1, %s10
  $region7: #{spectral_convergence.1} parent=0 // loop_footer_branch
    %9 = sbr.rel target = $region3
  $region8: #{spectral_convergence.1} parent=0 // loop_exit
    _

</llo_original>
